<compile_context>
chip_gen: v7x
topology: tpu7x:2x2x1
jax: 0.10.0
libtpu: 0.0.40
codegen_flags: <defaults>
</compile_context>

<pallas_src>
import functools

import numpy as np

import jax
import jax.numpy as jnp
from jax import lax
from jax.experimental import pallas as pl
from jax.experimental.pallas import tpu as pltpu


# ---------------------------------------------------------------------------
# In-kernel helpers (pure value ops; no scratch, no refs)
# ---------------------------------------------------------------------------

def _shift_lanes(y, d):
    """z[:, p] = y[:, p + d] when 0 <= p + d < N, else 0.  Static d."""
    if d == 0:
        return y
    C, N = y.shape
    fill = jnp.zeros((C, abs(d)), y.dtype)
    if d > 0:
        return jnp.concatenate([y[:, d:], fill], axis=1)
    return jnp.concatenate([fill, y[:, :N + d]], axis=1)


def _dw3x3_same(y, wk, masks, W):
    """3x3 depthwise conv, stride 1, zero padding.

    y:     (C, H*W) activations (channels on sublanes, pixels on lanes).
    wk:    (C, 9)   per-channel taps, tap index kh*3+kw.
    masks: (9, H*W) 1.0 where the tap's neighbour pixel is in-bounds.
    """
    acc = wk[:, 4:5] * y                                  # centre tap, always valid
    for kh in range(3):
        for kw in range(3):
            t = kh * 3 + kw
            if t == 4:
                continue
            d = (kh - 1) * W + (kw - 1)
            acc = acc + wk[:, t:t + 1] * (_shift_lanes(y, d) * masks[t:t + 1, :])
    return acc


def _dw3x3_strided(y, wk, colsel, H, W, Ho, Wo, stride):
    """3x3 depthwise conv with spatial stride, zero padding, computed only at
    output pixels (no full-resolution intermediate, no dense subsample matrix).

    y:      (C, H*W).
    wk:     (C, 9).
    colsel: (3, W, Wo) 0/1 column-subsample matrices, one per kw tap.
    Returns (C, Ho*Wo) float32.
    """
    C = y.shape[0]
    # Column-subsampled, kw-shifted copies of every needed input row (MXU work,
    # linear in pixels: 3 * (W x Wo) selection matrices shared by all rows).
    sub = {}
    for oh in range(Ho):
        for kh in range(3):
            ih = stride * oh + kh - 1
            if 0 <= ih < H and (ih, 0) not in sub:
                row = y[:, ih * W:(ih + 1) * W]            # (C, W)
                for kw in range(3):
                    sub[(ih, kw)] = jnp.dot(
                        row, colsel[kw], preferred_element_type=jnp.float32)

    out_rows = []
    for oh in range(Ho):
        acc = jnp.zeros((C, Wo), jnp.float32)
        for kh in range(3):
            ih = stride * oh + kh - 1
            if not 0 <= ih < H:
                continue                                   # zero-padding row
            for kw in range(3):
                t = kh * 3 + kw
                acc = acc + wk[:, t:t + 1] * sub[(ih, kw)]
        out_rows.append(acc)
    # TODO(synk): at large Ho assemble via a small VMEM scratch + fori_loop
    # instead of a wide lane concat, to bound live ranges.
    return jnp.concatenate(out_rows, axis=1)               # (C, Ho*Wo)


# ---------------------------------------------------------------------------
# Fused kernels (one pallas_call per residual unit)
# ---------------------------------------------------------------------------

def _stride1_kernel(x_ref, masks_ref, peven_ref,
                    pw1_w_ref, pw1_s_ref, pw1_b_ref,
                    dw_w_ref, dw_s_ref, dw_b_ref,
                    pw2_w_ref, pw2_s_ref, pw2_b_ref,
                    o_ref, *, W, branch):
    """stride=1 unit: pw1+BN+ReLU -> dw3x3+BN -> pw2+BN+ReLU on x2, x1
    pass-through, channel_shuffle(2) folded into the single output store."""
    x = x_ref[0].astype(jnp.float32)                       # (2*branch, H*W)
    x1 = x[:branch, :]
    x2 = x[branch:, :]

    h = jnp.dot(pw1_w_ref[...], x2, preferred_element_type=jnp.float32)
    h = jnp.maximum(h * pw1_s_ref[...] + pw1_b_ref[...], 0.0)

    d = _dw3x3_same(h, dw_w_ref[...], masks_ref[...], W)
    d = d * dw_s_ref[...] + dw_b_ref[...]                  # folded BN, no ReLU

    # pw2 weights/BN were pre-scattered onto the odd (shuffled) output rows;
    # the even rows of y2 are exactly zero (relu(0) == 0).
    y2 = jnp.dot(pw2_w_ref[...], d, preferred_element_type=jnp.float32)
    y2 = jnp.maximum(y2 * pw2_s_ref[...] + pw2_b_ref[...], 0.0)

    # x1 pass-through scattered onto the even (shuffled) rows via a tiny 0/1
    # matmul on the otherwise idle MXU; the sum interleaves the two branches.
    out = y2 + jnp.dot(peven_ref[...], x1, preferred_element_type=jnp.float32)
    o_ref[0] = out.astype(o_ref.dtype)                     # single lane-dense store


def _strided_kernel(x_ref, colsel_ref,
                    dw1_w_ref, dw1_s_ref, dw1_b_ref,
                    pw1_w_ref, pw1_s_ref, pw1_b_ref,
                    pw21_w_ref, pw21_s_ref, pw21_b_ref,
                    dw2_w_ref, dw2_s_ref, dw2_b_ref,
                    pw22_w_ref, pw22_s_ref, pw22_b_ref,
                    o_ref, *, H, W, Ho, Wo, stride):
    """stride>1 unit: both branches fused; one input read, one output store at
    output resolution with channel_shuffle(2) already applied."""
    x = x_ref[0].astype(jnp.float32)                       # (Cin, H*W)
    colsel = colsel_ref[...]                               # (3, W, Wo)

    # branch1: dw3x3(stride)+BN -> 1x1(+even-channel scatter)+BN+ReLU
    d1 = _dw3x3_strided(x, dw1_w_ref[...], colsel, H, W, Ho, Wo, stride)
    d1 = d1 * dw1_s_ref[...] + dw1_b_ref[...]
    y1 = jnp.dot(pw1_w_ref[...], d1, preferred_element_type=jnp.float32)
    y1 = jnp.maximum(y1 * pw1_s_ref[...] + pw1_b_ref[...], 0.0)

    # branch2: 1x1+BN+ReLU -> dw3x3(stride)+BN -> 1x1(+odd-channel scatter)+BN+ReLU
    h = jnp.dot(pw21_w_ref[...], x, preferred_element_type=jnp.float32)
    h = jnp.maximum(h * pw21_s_ref[...] + pw21_b_ref[...], 0.0)
    d2 = _dw3x3_strided(h, dw2_w_ref[...], colsel, H, W, Ho, Wo, stride)
    d2 = d2 * dw2_s_ref[...] + dw2_b_ref[...]
    y2 = jnp.dot(pw22_w_ref[...], d2, preferred_element_type=jnp.float32)
    y2 = jnp.maximum(y2 * pw22_s_ref[...] + pw22_b_ref[...], 0.0)

    o_ref[0] = (y1 + y2).astype(o_ref.dtype)               # disjoint channel support


# ---------------------------------------------------------------------------
# Wrapper-side constant builders (tiny, built once per call)
# ---------------------------------------------------------------------------

def _const_spec(shape):
    """Grid-invariant (broadcast) parameter block."""
    n = len(shape)
    return pl.BlockSpec(shape, lambda b, _n=n: (0,) * _n)


def _dw_masks(H, W):
    """(9, H*W) validity masks for the 3x3 zero-padded depthwise taps."""
    hh, ww = np.meshgrid(np.arange(H), np.arange(W), indexing="ij")
    masks = np.zeros((9, H * W), np.float32)
    for kh in range(3):
        for kw in range(3):
            dh, dw = kh - 1, kw - 1
            valid = (hh + dh >= 0) & (hh + dh < H) & (ww + dw >= 0) & (ww + dw < W)
            masks[kh * 3 + kw] = valid.reshape(-1).astype(np.float32)
    return masks


def _colsel(W, Wo, stride):
    """(3, W, Wo) 0/1 column-subsample matrices, one per kw tap."""
    sel = np.zeros((3, W, Wo), np.float32)
    for kw in range(3):
        for ow in range(Wo):
            w = stride * ow + kw - 1
            if 0 <= w < W:
                sel[kw, w, ow] = 1.0
    return sel


def _scatter(oup, parity):
    """(oup, oup//2) 0/1 matrix scattering branch channel b -> channel 2b+parity
    (i.e. channel_shuffle with group=2)."""
    m = np.zeros((oup, oup // 2), np.float32)
    m[np.arange(parity, oup, 2), np.arange(oup // 2)] = 1.0
    return m


def _fold_shuffle(scatter, w_io, s, b):
    """Fold folded-BN + the channel_shuffle scatter into a 1x1 conv's params.

    w_io: (Cin, Cb) (x@W orientation).  Returns W' (oup, Cin), s'/b' (oup, 1);
    rows not owned by this branch are exactly zero, so relu keeps them zero."""
    sc = jnp.asarray(scatter)
    return sc @ w_io.T, (sc @ s)[:, None], (sc @ b)[:, None]


# ---------------------------------------------------------------------------
# pallas_call wrappers
# ---------------------------------------------------------------------------

def _unit_stride1(x_flat, p, H, W):
    B, C, HW = x_flat.shape
    branch = C // 2
    oup = C

    masks = jnp.asarray(_dw_masks(H, W))
    peven = jnp.asarray(_scatter(oup, 0))
    pw2_w, pw2_s, pw2_b = _fold_shuffle(
        _scatter(oup, 1), p["pw2_w"], p["pw2_s"], p["pw2_b"])

    args = (
        x_flat, masks, peven,
        p["pw1_w"].T, p["pw1_s"][:, None], p["pw1_b"][:, None],
        p["dw_w"].reshape(9, branch).T, p["dw_s"][:, None], p["dw_b"][:, None],
        pw2_w, pw2_s, pw2_b,
    )
    in_specs = [pl.BlockSpec((1, C, HW), lambda b: (b, 0, 0))]
    in_specs += [_const_spec(a.shape) for a in args[1:]]

    return pl.pallas_call(
        functools.partial(_stride1_kernel, W=W, branch=branch),
        out_shape=jax.ShapeDtypeStruct((B, oup, HW), x_flat.dtype),
        grid_spec=pltpu.PrefetchScalarGridSpec(
            num_scalar_prefetch=0, grid=(B,),
            in_specs=in_specs,
            out_specs=pl.BlockSpec((1, oup, HW), lambda b: (b, 0, 0)),
        ),
        compiler_params=pltpu.CompilerParams(dimension_semantics=("parallel",)),
    )(*args)


def _unit_strided(x_flat, p1, p2, H, W, stride):
    B, Cin, HW = x_flat.shape
    branch = p2["pw2_w"].shape[1]
    oup = 2 * branch
    Ho = (H - 1) // stride + 1
    Wo = (W - 1) // stride + 1

    colsel = jnp.asarray(_colsel(W, Wo, stride))
    pw1_w, pw1_s, pw1_b = _fold_shuffle(
        _scatter(oup, 0), p1["pw_w"], p1["pw_s"], p1["pw_b"])
    pw22_w, pw22_s, pw22_b = _fold_shuffle(
        _scatter(oup, 1), p2["pw2_w"], p2["pw2_s"], p2["pw2_b"])

    args = (
        x_flat, colsel,
        p1["dw_w"].reshape(9, Cin).T, p1["dw_s"][:, None], p1["dw_b"][:, None],
        pw1_w, pw1_s, pw1_b,
        p2["pw1_w"].T, p2["pw1_s"][:, None], p2["pw1_b"][:, None],
        p2["dw_w"].reshape(9, branch).T, p2["dw_s"][:, None], p2["dw_b"][:, None],
        pw22_w, pw22_s, pw22_b,
    )
    in_specs = [pl.BlockSpec((1, Cin, HW), lambda b: (b, 0, 0))]
    in_specs += [_const_spec(a.shape) for a in args[1:]]

    return pl.pallas_call(
        functools.partial(_strided_kernel, H=H, W=W, Ho=Ho, Wo=Wo, stride=stride),
        out_shape=jax.ShapeDtypeStruct((B, oup, Ho * Wo), x_flat.dtype),
        grid_spec=pltpu.PrefetchScalarGridSpec(
            num_scalar_prefetch=0, grid=(B,),
            in_specs=in_specs,
            out_specs=pl.BlockSpec((1, oup, Ho * Wo), lambda b: (b, 0, 0)),
        ),
        compiler_params=pltpu.CompilerParams(dimension_semantics=("parallel",)),
    )(*args)


# ---------------------------------------------------------------------------
# InvertedResidual forward (matches the PyTorch module semantics, NCHW in/out)
# ---------------------------------------------------------------------------

def inverted_residual(x_nchw, params, stride):
    B, Cin, H, W = x_nchw.shape
    x_flat = x_nchw.reshape(B, Cin, H * W)                  # free reinterpretation

    if stride == 1:
        out_flat = _unit_stride1(x_flat, params["branch2"], H, W)
    else:
        out_flat = _unit_strided(x_flat, params["branch1"], params["branch2"],
                                 H, W, stride)

    oup = out_flat.shape[1]
    Ho = (H - 1) // stride + 1
    Wo = (W - 1) // stride + 1
    # channel_shuffle(group=2) was folded into the kernels' output stores.
    return out_flat.reshape(B, oup, Ho, Wo)


# ---------------------------------------------------------------------------
# Deterministic parameter init (BN folded into inference scale/bias)
# ---------------------------------------------------------------------------

def _fold_bn(gamma, beta, mean, var, eps=1e-5):
    scale = gamma / jnp.sqrt(var + eps)
    bias = beta - mean * scale
    return scale, bias


def _bn_params(key, c):
    k1, k2, k3, k4 = jax.random.split(key, 4)
    gamma = 1.0 + 0.1 * jax.random.normal(k1, (c,), jnp.float32)
    beta = 0.1 * jax.random.normal(k2, (c,), jnp.float32)
    mean = 0.1 * jax.random.normal(k3, (c,), jnp.float32)
    var = jax.random.uniform(k4, (c,), jnp.float32, 0.5, 1.5)
    return _fold_bn(gamma, beta, mean, var)


def init_params(key, inp, oup, stride):
    branch = oup // 2
    assert stride != 1 or inp == branch * 2
    keys = jax.random.split(key, 12)
    params = {}

    if stride > 1:
        dw_s, dw_b = _bn_params(keys[0], inp)
        pw_s, pw_b = _bn_params(keys[1], branch)
        params["branch1"] = {
            "dw_w": 0.3 * jax.random.normal(keys[2], (3, 3, inp), jnp.float32),
            "dw_s": dw_s, "dw_b": dw_b,
            "pw_w": 0.3 * jax.random.normal(keys[3], (inp, branch), jnp.float32),
            "pw_s": pw_s, "pw_b": pw_b,
        }

    b2_in = inp if stride > 1 else branch
    pw1_s, pw1_b = _bn_params(keys[4], branch)
    dw2_s, dw2_b = _bn_params(keys[5], branch)
    pw2_s, pw2_b = _bn_params(keys[6], branch)
    params["branch2"] = {
        "pw1_w": 0.3 * jax.random.normal(keys[7], (b2_in, branch), jnp.float32),
        "pw1_s": pw1_s, "pw1_b": pw1_b,
        "dw_w": 0.3 * jax.random.normal(keys[8], (3, 3, branch), jnp.float32),
        "dw_s": dw2_s, "dw_b": dw2_b,
        "pw2_w": 0.3 * jax.random.normal(keys[9], (branch, branch), jnp.float32),
        "pw2_s": pw2_s, "pw2_b": pw2_b,
    }
    return params


# ---------------------------------------------------------------------------
# Pure-JAX reference (correctness sanity check)
# ---------------------------------------------------------------------------

def _ref_pw(x, w_io, s, b, relu):
    y = jnp.einsum("bhwi,io->bhwo", x, w_io) * s + b
    return jnp.maximum(y, 0.0) if relu else y


def _ref_dw(x, w_hwc, s, b, stride):
    C = x.shape[-1]
    w = w_hwc.reshape(3, 3, 1, C)
    y = lax.conv_general_dilated(
        x, w, (stride, stride), ((1, 1), (1, 1)),
        dimension_numbers=("NHWC", "HWIO", "NHWC"), feature_group_count=C)
    return y * s + b


def reference_forward(x_nchw, params, stride):
    x = jnp.transpose(x_nchw, (0, 2, 3, 1))

    def br2(z, p):
        z = _ref_pw(z, p["pw1_w"], p["pw1_s"], p["pw1_b"], True)
        z = _ref_dw(z, p["dw_w"], p["dw_s"], p["dw_b"], stride)
        return _ref_pw(z, p["pw2_w"], p["pw2_s"], p["pw2_b"], True)

    if stride == 1:
        C = x.shape[-1]
        out = jnp.concatenate(
            [x[..., : C // 2], br2(x[..., C // 2:], params["branch2"])], axis=-1)
    else:
        p1 = params["branch1"]
        b1 = _ref_pw(_ref_dw(x, p1["dw_w"], p1["dw_s"], p1["dw_b"], stride),
                     p1["pw_w"], p1["pw_s"], p1["pw_b"], True)
        out = jnp.concatenate([b1, br2(x, params["branch2"])], axis=-1)

    B, H, W, C = out.shape
    out = out.reshape(B, H, W, 2, C // 2)
    out = jnp.swapaxes(out, 3, 4).reshape(B, H, W, C)
    return jnp.transpose(out, (0, 3, 1, 2))


# ---------------------------------------------------------------------------

if __name__ == "__main__":
    key = jax.random.PRNGKey(0)
    kx, kp1, kp2 = jax.random.split(key, 3)

    # Case 1: stride=1 (split / pass-through / concat path)
    inp, oup, stride = 8, 8, 1
    x = jax.random.normal(kx, (2, inp, 16, 16), jnp.float32)   # NCHW
    params1 = init_params(kp1, inp, oup, stride)
    out1 = jax.block_until_ready(inverted_residual(x, params1, stride))
    ref1 = reference_forward(x, params1, stride)
    assert out1.shape == (2, oup, 16, 16)
    assert jnp.allclose(out1, ref1, rtol=1e-3, atol=1e-3), \
        float(jnp.max(jnp.abs(out1 - ref1)))

    # Case 2: stride=2 (two-branch downsampling path)
    inp2, oup2, stride2 = 8, 16, 2
    params2 = init_params(kp2, inp2, oup2, stride2)
    out2 = jax.block_until_ready(inverted_residual(x, params2, stride2))
    ref2 = reference_forward(x, params2, stride2)
    assert out2.shape == (2, oup2, 8, 8)
    assert jnp.allclose(out2, ref2, rtol=1e-3, atol=1e-3), \
        float(jnp.max(jnp.abs(out2 - ref2)))

    print("KERNEL_OK")
</pallas_src>

<mosaic_0001>
module attributes {stable_mosaic.version = 11 : i64} {
  func.func @_stride1_kernel(%arg0: i32, %arg1: memref<1x8x256xf32, #tpu.memory_space<vmem>>, %arg2: memref<9x256xf32, #tpu.memory_space<vmem>>, %arg3: memref<8x4xf32, #tpu.memory_space<vmem>>, %arg4: memref<4x4xf32, #tpu.memory_space<vmem>>, %arg5: memref<4x1xf32, #tpu.memory_space<vmem>>, %arg6: memref<4x1xf32, #tpu.memory_space<vmem>>, %arg7: memref<4x9xf32, #tpu.memory_space<vmem>>, %arg8: memref<4x1xf32, #tpu.memory_space<vmem>>, %arg9: memref<4x1xf32, #tpu.memory_space<vmem>>, %arg10: memref<8x4xf32, #tpu.memory_space<vmem>>, %arg11: memref<8x1xf32, #tpu.memory_space<vmem>>, %arg12: memref<8x1xf32, #tpu.memory_space<vmem>>, %arg13: memref<1x8x256xf32, #tpu.memory_space<vmem>>) attributes {dimension_semantics = [#tpu.dimension_semantics<parallel>], iteration_bounds = array<i64: 2>, scalar_prefetch = 0 : i64, scratch_operands = 0 : i64, tpu.core_type = #tpu.core_type<tc>, window_params = [{transform_indices = @transform_0, window_bounds = array<i64: 1, 8, 256>}, {pipeline_mode = #tpu.pipeline_mode<synchronous>, transform_indices = @transform_1, window_bounds = array<i64: 9, 256>}, {pipeline_mode = #tpu.pipeline_mode<synchronous>, transform_indices = @transform_2, window_bounds = array<i64: 8, 4>}, {pipeline_mode = #tpu.pipeline_mode<synchronous>, transform_indices = @transform_3, window_bounds = array<i64: 4, 4>}, {pipeline_mode = #tpu.pipeline_mode<synchronous>, transform_indices = @transform_4, window_bounds = array<i64: 4, 1>}, {pipeline_mode = #tpu.pipeline_mode<synchronous>, transform_indices = @transform_5, window_bounds = array<i64: 4, 1>}, {pipeline_mode = #tpu.pipeline_mode<synchronous>, transform_indices = @transform_6, window_bounds = array<i64: 4, 9>}, {pipeline_mode = #tpu.pipeline_mode<synchronous>, transform_indices = @transform_7, window_bounds = array<i64: 4, 1>}, {pipeline_mode = #tpu.pipeline_mode<synchronous>, transform_indices = @transform_8, window_bounds = array<i64: 4, 1>}, {pipeline_mode = #tpu.pipeline_mode<synchronous>, transform_indices = @transform_9, window_bounds = array<i64: 8, 4>}, {pipeline_mode = #tpu.pipeline_mode<synchronous>, transform_indices = @transform_10, window_bounds = array<i64: 8, 1>}, {pipeline_mode = #tpu.pipeline_mode<synchronous>, transform_indices = @transform_11, window_bounds = array<i64: 8, 1>}, {transform_indices = @transform_12, window_bounds = array<i64: 1, 8, 256>}]} {
    %c0 = arith.constant 0 : index
    %c0_0 = arith.constant 0 : index
    %c0_1 = arith.constant 0 : index
    %0 = vector.load %arg1[%c0, %c0_0, %c0_1] : memref<1x8x256xf32, #tpu.memory_space<vmem>>, vector<1x8x256xf32>
    %1 = vector.shape_cast %0 : vector<1x8x256xf32> to vector<8x256xf32>
    %2 = vector.extract_strided_slice %1 {offsets = [0, 0], sizes = [4, 256], strides = [1, 1]} : vector<8x256xf32> to vector<4x256xf32>
    %3 = vector.extract_strided_slice %1 {offsets = [4, 0], sizes = [4, 256], strides = [1, 1]} : vector<8x256xf32> to vector<4x256xf32>
    %c0_2 = arith.constant 0 : index
    %c0_3 = arith.constant 0 : index
    %4 = vector.load %arg4[%c0_2, %c0_3] : memref<4x4xf32, #tpu.memory_space<vmem>>, vector<4x4xf32>
    %cst = arith.constant dense<0.000000e+00> : vector<4x256xf32>
    %5 = tpu.matmul %4, %3, %cst {dimension_numbers = #tpu.dot_dimension_numbers<[1], [0], [0], [1], [0, 0, 1, 1], [], []>} : vector<4x4xf32>, vector<4x256xf32>, vector<4x256xf32> -> vector<4x256xf32>
    %c0_4 = arith.constant 0 : index
    %c0_5 = arith.constant 0 : index
    %6 = vector.load %arg5[%c0_4, %c0_5] : memref<4x1xf32, #tpu.memory_space<vmem>>, vector<4x1xf32>
    %7 = vector.broadcast %6 : vector<4x1xf32> to vector<4x256xf32>
    %8 = arith.mulf %5, %7 : vector<4x256xf32>
    %c0_6 = arith.constant 0 : index
    %c0_7 = arith.constant 0 : index
    %9 = vector.load %arg6[%c0_6, %c0_7] : memref<4x1xf32, #tpu.memory_space<vmem>>, vector<4x1xf32>
    %10 = vector.broadcast %9 : vector<4x1xf32> to vector<4x256xf32>
    %11 = arith.addf %8, %10 : vector<4x256xf32>
    %cst_8 = arith.constant 0.000000e+00 : f32
    %12 = vector.broadcast %cst_8 : f32 to vector<4x256xf32>
    %13 = arith.maximumf %11, %12 : vector<4x256xf32>
    %c0_9 = arith.constant 0 : index
    %c0_10 = arith.constant 0 : index
    %14 = vector.load %arg7[%c0_9, %c0_10] : memref<4x9xf32, #tpu.memory_space<vmem>>, vector<4x9xf32>
    %c0_11 = arith.constant 0 : index
    %c0_12 = arith.constant 0 : index
    %15 = vector.load %arg2[%c0_11, %c0_12] : memref<9x256xf32, #tpu.memory_space<vmem>>, vector<9x256xf32>
    %16 = vector.extract_strided_slice %14 {offsets = [0, 4], sizes = [4, 1], strides = [1, 1]} : vector<4x9xf32> to vector<4x1xf32>
    %17 = vector.broadcast %16 : vector<4x1xf32> to vector<4x256xf32>
    %18 = arith.mulf %17, %13 : vector<4x256xf32>
    %19 = vector.extract_strided_slice %14 {offsets = [0, 0], sizes = [4, 1], strides = [1, 1]} : vector<4x9xf32> to vector<4x1xf32>
    %cst_13 = arith.constant 0.000000e+00 : f32
    %20 = vector.broadcast %cst_13 : f32 to vector<4x17xf32>
    %21 = vector.extract_strided_slice %13 {offsets = [0, 0], sizes = [4, 239], strides = [1, 1]} : vector<4x256xf32> to vector<4x239xf32>
    %22 = tpu.concatenate %20, %21 in 1 : vector<4x17xf32>, vector<4x239xf32> -> vector<4x256xf32>
    %23 = vector.extract_strided_slice %15 {offsets = [0, 0], sizes = [1, 256], strides = [1, 1]} : vector<9x256xf32> to vector<1x256xf32>
    %24 = vector.broadcast %23 : vector<1x256xf32> to vector<4x256xf32>
    %25 = arith.mulf %22, %24 : vector<4x256xf32>
    %26 = vector.broadcast %19 : vector<4x1xf32> to vector<4x256xf32>
    %27 = arith.mulf %26, %25 : vector<4x256xf32>
    %28 = arith.addf %18, %27 : vector<4x256xf32>
    %29 = vector.extract_strided_slice %14 {offsets = [0, 1], sizes = [4, 1], strides = [1, 1]} : vector<4x9xf32> to vector<4x1xf32>
    %cst_14 = arith.constant 0.000000e+00 : f32
    %30 = vector.broadcast %cst_14 : f32 to vector<4x16xf32>
    %31 = vector.extract_strided_slice %13 {offsets = [0, 0], sizes = [4, 240], strides = [1, 1]} : vector<4x256xf32> to vector<4x240xf32>
    %32 = tpu.concatenate %30, %31 in 1 : vector<4x16xf32>, vector<4x240xf32> -> vector<4x256xf32>
    %33 = vector.extract_strided_slice %15 {offsets = [1, 0], sizes = [1, 256], strides = [1, 1]} : vector<9x256xf32> to vector<1x256xf32>
    %34 = vector.broadcast %33 : vector<1x256xf32> to vector<4x256xf32>
    %35 = arith.mulf %32, %34 : vector<4x256xf32>
    %36 = vector.broadcast %29 : vector<4x1xf32> to vector<4x256xf32>
    %37 = arith.mulf %36, %35 : vector<4x256xf32>
    %38 = arith.addf %28, %37 : vector<4x256xf32>
    %39 = vector.extract_strided_slice %14 {offsets = [0, 2], sizes = [4, 1], strides = [1, 1]} : vector<4x9xf32> to vector<4x1xf32>
    %cst_15 = arith.constant 0.000000e+00 : f32
    %40 = vector.broadcast %cst_15 : f32 to vector<4x15xf32>
    %41 = vector.extract_strided_slice %13 {offsets = [0, 0], sizes = [4, 241], strides = [1, 1]} : vector<4x256xf32> to vector<4x241xf32>
    %42 = tpu.concatenate %40, %41 in 1 : vector<4x15xf32>, vector<4x241xf32> -> vector<4x256xf32>
    %43 = vector.extract_strided_slice %15 {offsets = [2, 0], sizes = [1, 256], strides = [1, 1]} : vector<9x256xf32> to vector<1x256xf32>
    %44 = vector.broadcast %43 : vector<1x256xf32> to vector<4x256xf32>
    %45 = arith.mulf %42, %44 : vector<4x256xf32>
    %46 = vector.broadcast %39 : vector<4x1xf32> to vector<4x256xf32>
    %47 = arith.mulf %46, %45 : vector<4x256xf32>
    %48 = arith.addf %38, %47 : vector<4x256xf32>
    %49 = vector.extract_strided_slice %14 {offsets = [0, 3], sizes = [4, 1], strides = [1, 1]} : vector<4x9xf32> to vector<4x1xf32>
    %cst_16 = arith.constant 0.000000e+00 : f32
    %50 = vector.broadcast %cst_16 : f32 to vector<4x1xf32>
    %51 = vector.extract_strided_slice %13 {offsets = [0, 0], sizes = [4, 255], strides = [1, 1]} : vector<4x256xf32> to vector<4x255xf32>
    %52 = tpu.concatenate %50, %51 in 1 : vector<4x1xf32>, vector<4x255xf32> -> vector<4x256xf32>
    %53 = vector.extract_strided_slice %15 {offsets = [3, 0], sizes = [1, 256], strides = [1, 1]} : vector<9x256xf32> to vector<1x256xf32>
    %54 = vector.broadcast %53 : vector<1x256xf32> to vector<4x256xf32>
    %55 = arith.mulf %52, %54 : vector<4x256xf32>
    %56 = vector.broadcast %49 : vector<4x1xf32> to vector<4x256xf32>
    %57 = arith.mulf %56, %55 : vector<4x256xf32>
    %58 = arith.addf %48, %57 : vector<4x256xf32>
    %59 = vector.extract_strided_slice %14 {offsets = [0, 5], sizes = [4, 1], strides = [1, 1]} : vector<4x9xf32> to vector<4x1xf32>
    %cst_17 = arith.constant 0.000000e+00 : f32
    %60 = vector.broadcast %cst_17 : f32 to vector<4x1xf32>
    %61 = vector.extract_strided_slice %13 {offsets = [0, 1], sizes = [4, 255], strides = [1, 1]} : vector<4x256xf32> to vector<4x255xf32>
    %62 = tpu.concatenate %61, %60 in 1 : vector<4x255xf32>, vector<4x1xf32> -> vector<4x256xf32>
    %63 = vector.extract_strided_slice %15 {offsets = [5, 0], sizes = [1, 256], strides = [1, 1]} : vector<9x256xf32> to vector<1x256xf32>
    %64 = vector.broadcast %63 : vector<1x256xf32> to vector<4x256xf32>
    %65 = arith.mulf %62, %64 : vector<4x256xf32>
    %66 = vector.broadcast %59 : vector<4x1xf32> to vector<4x256xf32>
    %67 = arith.mulf %66, %65 : vector<4x256xf32>
    %68 = arith.addf %58, %67 : vector<4x256xf32>
    %69 = vector.extract_strided_slice %14 {offsets = [0, 6], sizes = [4, 1], strides = [1, 1]} : vector<4x9xf32> to vector<4x1xf32>
    %cst_18 = arith.constant 0.000000e+00 : f32
    %70 = vector.broadcast %cst_18 : f32 to vector<4x15xf32>
    %71 = vector.extract_strided_slice %13 {offsets = [0, 15], sizes = [4, 241], strides = [1, 1]} : vector<4x256xf32> to vector<4x241xf32>
    %72 = tpu.concatenate %71, %70 in 1 : vector<4x241xf32>, vector<4x15xf32> -> vector<4x256xf32>
    %73 = vector.extract_strided_slice %15 {offsets = [6, 0], sizes = [1, 256], strides = [1, 1]} : vector<9x256xf32> to vector<1x256xf32>
    %74 = vector.broadcast %73 : vector<1x256xf32> to vector<4x256xf32>
    %75 = arith.mulf %72, %74 : vector<4x256xf32>
    %76 = vector.broadcast %69 : vector<4x1xf32> to vector<4x256xf32>
    %77 = arith.mulf %76, %75 : vector<4x256xf32>
    %78 = arith.addf %68, %77 : vector<4x256xf32>
    %79 = vector.extract_strided_slice %14 {offsets = [0, 7], sizes = [4, 1], strides = [1, 1]} : vector<4x9xf32> to vector<4x1xf32>
    %cst_19 = arith.constant 0.000000e+00 : f32
    %80 = vector.broadcast %cst_19 : f32 to vector<4x16xf32>
    %81 = vector.extract_strided_slice %13 {offsets = [0, 16], sizes = [4, 240], strides = [1, 1]} : vector<4x256xf32> to vector<4x240xf32>
    %82 = tpu.concatenate %81, %80 in 1 : vector<4x240xf32>, vector<4x16xf32> -> vector<4x256xf32>
    %83 = vector.extract_strided_slice %15 {offsets = [7, 0], sizes = [1, 256], strides = [1, 1]} : vector<9x256xf32> to vector<1x256xf32>
    %84 = vector.broadcast %83 : vector<1x256xf32> to vector<4x256xf32>
    %85 = arith.mulf %82, %84 : vector<4x256xf32>
    %86 = vector.broadcast %79 : vector<4x1xf32> to vector<4x256xf32>
    %87 = arith.mulf %86, %85 : vector<4x256xf32>
    %88 = arith.addf %78, %87 : vector<4x256xf32>
    %89 = vector.extract_strided_slice %14 {offsets = [0, 8], sizes = [4, 1], strides = [1, 1]} : vector<4x9xf32> to vector<4x1xf32>
    %cst_20 = arith.constant 0.000000e+00 : f32
    %90 = vector.broadcast %cst_20 : f32 to vector<4x17xf32>
    %91 = vector.extract_strided_slice %13 {offsets = [0, 17], sizes = [4, 239], strides = [1, 1]} : vector<4x256xf32> to vector<4x239xf32>
    %92 = tpu.concatenate %91, %90 in 1 : vector<4x239xf32>, vector<4x17xf32> -> vector<4x256xf32>
    %93 = vector.extract_strided_slice %15 {offsets = [8, 0], sizes = [1, 256], strides = [1, 1]} : vector<9x256xf32> to vector<1x256xf32>
    %94 = vector.broadcast %93 : vector<1x256xf32> to vector<4x256xf32>
    %95 = arith.mulf %92, %94 : vector<4x256xf32>
    %96 = vector.broadcast %89 : vector<4x1xf32> to vector<4x256xf32>
    %97 = arith.mulf %96, %95 : vector<4x256xf32>
    %98 = arith.addf %88, %97 : vector<4x256xf32>
    %c0_21 = arith.constant 0 : index
    %c0_22 = arith.constant 0 : index
    %99 = vector.load %arg8[%c0_21, %c0_22] : memref<4x1xf32, #tpu.memory_space<vmem>>, vector<4x1xf32>
    %100 = vector.broadcast %99 : vector<4x1xf32> to vector<4x256xf32>
    %101 = arith.mulf %98, %100 : vector<4x256xf32>
    %c0_23 = arith.constant 0 : index
    %c0_24 = arith.constant 0 : index
    %102 = vector.load %arg9[%c0_23, %c0_24] : memref<4x1xf32, #tpu.memory_space<vmem>>, vector<4x1xf32>
    %103 = vector.broadcast %102 : vector<4x1xf32> to vector<4x256xf32>
    %104 = arith.addf %101, %103 : vector<4x256xf32>
    %c0_25 = arith.constant 0 : index
    %c0_26 = arith.constant 0 : index
    %105 = vector.load %arg10[%c0_25, %c0_26] : memref<8x4xf32, #tpu.memory_space<vmem>>, vector<8x4xf32>
    %cst_27 = arith.constant dense<0.000000e+00> : vector<8x256xf32>
    %106 = tpu.matmul %105, %104, %cst_27 {dimension_numbers = #tpu.dot_dimension_numbers<[1], [0], [0], [1], [0, 0, 1, 1], [], []>} : vector<8x4xf32>, vector<4x256xf32>, vector<8x256xf32> -> vector<8x256xf32>
    %c0_28 = arith.constant 0 : index
    %c0_29 = arith.constant 0 : index
    %107 = vector.load %arg11[%c0_28, %c0_29] : memref<8x1xf32, #tpu.memory_space<vmem>>, vector<8x1xf32>
    %108 = vector.broadcast %107 : vector<8x1xf32> to vector<8x256xf32>
    %109 = arith.mulf %106, %108 : vector<8x256xf32>
    %c0_30 = arith.constant 0 : index
    %c0_31 = arith.constant 0 : index
    %110 = vector.load %arg12[%c0_30, %c0_31] : memref<8x1xf32, #tpu.memory_space<vmem>>, vector<8x1xf32>
    %111 = vector.broadcast %110 : vector<8x1xf32> to vector<8x256xf32>
    %112 = arith.addf %109, %111 : vector<8x256xf32>
    %cst_32 = arith.constant 0.000000e+00 : f32
    %113 = vector.broadcast %cst_32 : f32 to vector<8x256xf32>
    %114 = arith.maximumf %112, %113 : vector<8x256xf32>
    %c0_33 = arith.constant 0 : index
    %c0_34 = arith.constant 0 : index
    %115 = vector.load %arg3[%c0_33, %c0_34] : memref<8x4xf32, #tpu.memory_space<vmem>>, vector<8x4xf32>
    %cst_35 = arith.constant dense<0.000000e+00> : vector<8x256xf32>
    %116 = tpu.matmul %115, %2, %cst_35 {dimension_numbers = #tpu.dot_dimension_numbers<[1], [0], [0], [1], [0, 0, 1, 1], [], []>} : vector<8x4xf32>, vector<4x256xf32>, vector<8x256xf32> -> vector<8x256xf32>
    %117 = arith.addf %114, %116 : vector<8x256xf32>
    %c0_36 = arith.constant 0 : index
    %c0_37 = arith.constant 0 : index
    %c0_38 = arith.constant 0 : index
    %118 = vector.load %arg13[%c0_36, %c0_37, %c0_38] : memref<1x8x256xf32, #tpu.memory_space<vmem>>, vector<1x8x256xf32>
    %119 = vector.shape_cast %118 : vector<1x8x256xf32> to vector<8x256xf32>
    %120 = vector.shape_cast %117 : vector<8x256xf32> to vector<1x8x256xf32>
    tpu.vector_store %arg13[%c0_36, %c0_37, %c0_38], %120 {strides = array<i32>} : memref<1x8x256xf32, #tpu.memory_space<vmem>>, vector<1x8x256xf32>,
    return
  }
  func.func @transform_0(%arg0: i32) -> (i32, i32, i32) {
    %c0_i32 = arith.constant 0 : i32
    %c0_i32_0 = arith.constant 0 : i32
    %c0_i32_1 = arith.constant 0 : i32
    return %arg0, %c0_i32, %c0_i32_0 : i32, i32, i32
  }
  func.func @transform_1(%arg0: i32) -> (i32, i32) {
    %c0_i32 = arith.constant 0 : i32
    %c0_i32_0 = arith.constant 0 : i32
    %c0_i32_1 = arith.constant 0 : i32
    return %c0_i32, %c0_i32_0 : i32, i32
  }
  func.func @transform_2(%arg0: i32) -> (i32, i32) {
    %c0_i32 = arith.constant 0 : i32
    %c0_i32_0 = arith.constant 0 : i32
    %c0_i32_1 = arith.constant 0 : i32
    return %c0_i32, %c0_i32_0 : i32, i32
  }
  func.func @transform_3(%arg0: i32) -> (i32, i32) {
    %c0_i32 = arith.constant 0 : i32
    %c0_i32_0 = arith.constant 0 : i32
    %c0_i32_1 = arith.constant 0 : i32
    return %c0_i32, %c0_i32_0 : i32, i32
  }
  func.func @transform_4(%arg0: i32) -> (i32, i32) {
    %c0_i32 = arith.constant 0 : i32
    %c0_i32_0 = arith.constant 0 : i32
    %c0_i32_1 = arith.constant 0 : i32
    return %c0_i32, %c0_i32_0 : i32, i32
  }
  func.func @transform_5(%arg0: i32) -> (i32, i32) {
    %c0_i32 = arith.constant 0 : i32
    %c0_i32_0 = arith.constant 0 : i32
    %c0_i32_1 = arith.constant 0 : i32
    return %c0_i32, %c0_i32_0 : i32, i32
  }
  func.func @transform_6(%arg0: i32) -> (i32, i32) {
    %c0_i32 = arith.constant 0 : i32
    %c0_i32_0 = arith.constant 0 : i32
    %c0_i32_1 = arith.constant 0 : i32
    return %c0_i32, %c0_i32_0 : i32, i32
  }
  func.func @transform_7(%arg0: i32) -> (i32, i32) {
    %c0_i32 = arith.constant 0 : i32
    %c0_i32_0 = arith.constant 0 : i32
    %c0_i32_1 = arith.constant 0 : i32
    return %c0_i32, %c0_i32_0 : i32, i32
  }
  func.func @transform_8(%arg0: i32) -> (i32, i32) {
    %c0_i32 = arith.constant 0 : i32
    %c0_i32_0 = arith.constant 0 : i32
    %c0_i32_1 = arith.constant 0 : i32
    return %c0_i32, %c0_i32_0 : i32, i32
  }
  func.func @transform_9(%arg0: i32) -> (i32, i32) {
    %c0_i32 = arith.constant 0 : i32
    %c0_i32_0 = arith.constant 0 : i32
    %c0_i32_1 = arith.constant 0 : i32
    return %c0_i32, %c0_i32_0 : i32, i32
  }
  func.func @transform_10(%arg0: i32) -> (i32, i32) {
    %c0_i32 = arith.constant 0 : i32
    %c0_i32_0 = arith.constant 0 : i32
    %c0_i32_1 = arith.constant 0 : i32
    return %c0_i32, %c0_i32_0 : i32, i32
  }
  func.func @transform_11(%arg0: i32) -> (i32, i32) {
    %c0_i32 = arith.constant 0 : i32
    %c0_i32_0 = arith.constant 0 : i32
    %c0_i32_1 = arith.constant 0 : i32
    return %c0_i32, %c0_i32_0 : i32, i32
  }
  func.func @transform_12(%arg0: i32) -> (i32, i32, i32) {
    %c0_i32 = arith.constant 0 : i32
    %c0_i32_0 = arith.constant 0 : i32
    %c0_i32_1 = arith.constant 0 : i32
    return %arg0, %c0_i32, %c0_i32_0 : i32, i32, i32
  }
}

</mosaic_0001>

<llo_original>
// kernel: tpu_custom_call.1
$region0: #{tpu_custom_call.1}
  #allocation0 [shape = 'u32[]', space=smem, size = 0x4, offset = 0x4, fixed_abs, tag = 'smem constant byte address 0x4 - core index']
  #allocation1 [shape = 'u32[144,128]{1,0:T(1,128)}', space=vmem, size = 0x12000, scoped, tag = 'internal scratch']
  %s0 = inlined_call_operand.vmem [shape: f32[2,8,256], index: 0, kind: input, shape index: {}]
  %s1 = inlined_call_operand.vmem [shape: f32[9,256], index: 1, kind: input, shape index: {}]
  %s2 = inlined_call_operand.vmem [shape: f32[8,4], index: 2, kind: input, shape index: {}]
  %s3 = inlined_call_operand.hbm [shape: f32[4,4], index: 3, kind: input, shape index: {}]
  %s4 = inlined_call_operand.vmem [shape: f32[4,1], index: 4, kind: input, shape index: {}]
  %s5 = inlined_call_operand.vmem [shape: f32[4,1], index: 5, kind: input, shape index: {}]
  %s6 = inlined_call_operand.vmem [shape: f32[4,9], index: 6, kind: input, shape index: {}]
  %s7 = inlined_call_operand.vmem [shape: f32[4,1], index: 7, kind: input, shape index: {}]
  %s8 = inlined_call_operand.vmem [shape: f32[4,1], index: 8, kind: input, shape index: {}]
  %s9 = inlined_call_operand.vmem [shape: f32[8,4], index: 9, kind: input, shape index: {}]
  %s10 = inlined_call_operand.vmem [shape: f32[8,1], index: 10, kind: input, shape index: {}]
  %s11 = inlined_call_operand.vmem [shape: f32[8,1], index: 11, kind: input, shape index: {}]
  %s12 = inlined_call_operand.hbm [shape: f32[2,8,256], index: 12, kind: output, shape index: {}]
  %s13 = sld [smem:[#allocation0]]
  $region85: #{tpu_custom_call.1} parent=0
    _
  %s15 = ssub.s32 1, %s13
  %s16 = scalar_select 0, %s15, %s13
  $region1: #{tpu_custom_call.1} parent=0
    #allocation2 [shape = 'u8[2048]{0}', space=vmem, size = 0x800, scoped, tag = 'input window, operand 3, single buffered']
    #allocation3 [shape = 's32[2]{0}', space=sflag, size = 0x8, scoped, tag = 'scoped memory for tpu_custom_call.1']
    #allocation4 [shape = 's32[2]{0}', space=sflag, size = 0x8, scoped, tag = 'scoped memory for tpu_custom_call.1']
    #allocation5 [shape = 'u8[16384]{0}', space=vmem, size = 0x4000, scoped, tag = 'output window, operand 0']
    %17 = vsyncpa [#allocation3], 0
    %18 = vsyncpa [#allocation4], 0
    %s19 = scalar_lea.sflag [#allocation4], 1
    %20 = vsyncpa %s19, 0
    loop: start=0, step=1, limit=4
    $region2: #{tpu_custom_call.1} parent=1 // loop_pre_header
      _
    $region3: #{tpu_custom_call.1} parent=1 // loop_header
      %s22 = sphi 0, %s26
      %p23 = scmp.ge.s32.totalorder %s22, 4
      %s32 = sphi 0, %s34
      %s35 = sphi 0, %s32
      %s36 = sphi 0, %s35
      %s52 = sphi 0, %s36
      %s56 = sphi 0, %s56
      %s58 = sphi 0, %s56
      %s59 = sphi 0, %s58
      %s73 = sphi 0, %s59
      %s77 = sphi 0, %s77
      %s79 = sphi 0, %s77
      %s80 = sphi 0, %s79
      %s94 = sphi 0, %s80
      %s98 = sphi 0, %s98
      %s100 = sphi 0, %s98
      %s101 = sphi 0, %s100
      %s115 = sphi 0, %s101
      %s119 = sphi 0, %s119
      %s121 = sphi 0, %s119
      %s122 = sphi 0, %s121
      %s136 = sphi 0, %s122
      %s140 = sphi 0, %s140
      %s142 = sphi 0, %s140
      %s143 = sphi 0, %s142
      %s157 = sphi 0, %s143
      %s161 = sphi 0, %s161
      %s163 = sphi 0, %s161
      %s164 = sphi 0, %s163
      %s178 = sphi 0, %s164
      %s182 = sphi 0, %s182
      %s184 = sphi 0, %s182
      %s185 = sphi 0, %s184
      %s199 = sphi 0, %s185
      %s203 = sphi 0, %s203
      %s205 = sphi 0, %s203
      %s206 = sphi 0, %s205
      %s220 = sphi 0, %s206
      %s224 = sphi 0, %s224
      %s226 = sphi 0, %s224
      %s227 = sphi 0, %s226
      %s241 = sphi 0, %s227
      %s245 = sphi 0, %s245
      %s247 = sphi 0, %s245
      %s248 = sphi 0, %s247
      %s262 = sphi 0, %s248
      %s266 = sphi 0, %s266
      %s268 = sphi 0, %s266
      %s269 = sphi 0, %s268
      %s283 = sphi 0, %s269
      %s289 = sphi 0, %s291
      %s292 = sphi 0, %s289
      %s293 = sphi 0, %s292
      %s309 = sphi 0, %s293
    $region4: #{tpu_custom_call.1} parent=1 // loop_header_branch
      %25 = sbr.rel (%p23) target = $region8
    $region5: #{tpu_custom_call.1} parent=1 // loop_body
      %s27 = ssub.s32 %s22, 1
      %s28 = ssub.s32 %s22, 2
      %s29 = sadd.s32 %s22, 1
      %s30 = ssub.s32 %s22, %s29
      %p31 = scmp.eq.s32.totalorder %s30, 0
      %s33 = sadd.s32 %s32, 1
      %s34 = scalar_select %p31, %s32, %s33
      %p37 = pneg %p31
      %p38 = scmp.eq.s32.totalorder %s22, 1
      %p39 = por %p37, %p38
      %p40 = scmp.ne.s32.totalorder %s32, %s35
      %p41 = scmp.eq.s32.totalorder %s22, 0
      %p42 = por %p40, %p41
      %p43 = scmp.ne.s32.totalorder %s32, %s35
      %p44 = scmp.eq.s32.totalorder %s27, 1
      %p45 = por %p43, %p44
      %p46 = scmp.ne.s32.totalorder %s35, %s36
      %p47 = scmp.eq.s32.totalorder %s27, 0
      %p48 = por %p46, %p47
      %p49 = scmp.ne.s32.totalorder %s35, %s36
      %p50 = scmp.eq.s32.totalorder %s28, 1
      %p51 = por %p49, %p50
      %p53 = scmp.ne.s32.totalorder %s36, %s52
      %p54 = scmp.eq.s32.totalorder %s28, 0
      %p55 = por %p53, %p54
      %s57 = sadd.s32 %s56, 1
      %p60 = scmp.eq.s32.totalorder %s22, 1
      %p61 = scmp.ne.s32.totalorder %s56, %s58
      %p62 = scmp.eq.s32.totalorder %s22, 0
      %p63 = por %p61, %p62
      %p64 = scmp.ne.s32.totalorder %s56, %s58
      %p65 = scmp.eq.s32.totalorder %s27, 1
      %p66 = por %p64, %p65
      %p67 = scmp.ne.s32.totalorder %s58, %s59
      %p68 = scmp.eq.s32.totalorder %s27, 0
      %p69 = por %p67, %p68
      %p70 = scmp.ne.s32.totalorder %s58, %s59
      %p71 = scmp.eq.s32.totalorder %s28, 1
      %p72 = por %p70, %p71
      %p74 = scmp.ne.s32.totalorder %s59, %s73
      %p75 = scmp.eq.s32.totalorder %s28, 0
      %p76 = por %p74, %p75
      %s78 = sadd.s32 %s77, 1
      %p81 = scmp.eq.s32.totalorder %s22, 1
      %p82 = scmp.ne.s32.totalorder %s77, %s79
      %p83 = scmp.eq.s32.totalorder %s22, 0
      %p84 = por %p82, %p83
      %p85 = scmp.ne.s32.totalorder %s77, %s79
      %p86 = scmp.eq.s32.totalorder %s27, 1
      %p87 = por %p85, %p86
      %p88 = scmp.ne.s32.totalorder %s79, %s80
      %p89 = scmp.eq.s32.totalorder %s27, 0
      %p90 = por %p88, %p89
      %p91 = scmp.ne.s32.totalorder %s79, %s80
      %p92 = scmp.eq.s32.totalorder %s28, 1
      %p93 = por %p91, %p92
      %p95 = scmp.ne.s32.totalorder %s80, %s94
      %p96 = scmp.eq.s32.totalorder %s28, 0
      %p97 = por %p95, %p96
      %s99 = sadd.s32 %s98, 1
      %p102 = scmp.eq.s32.totalorder %s22, 1
      %p103 = scmp.ne.s32.totalorder %s98, %s100
      %p104 = scmp.eq.s32.totalorder %s22, 0
      %p105 = por %p103, %p104
      %p106 = scmp.ne.s32.totalorder %s98, %s100
      %p107 = scmp.eq.s32.totalorder %s27, 1
      %p108 = por %p106, %p107
      %p109 = scmp.ne.s32.totalorder %s100, %s101
      %p110 = scmp.eq.s32.totalorder %s27, 0
      %p111 = por %p109, %p110
      %p112 = scmp.ne.s32.totalorder %s100, %s101
      %p113 = scmp.eq.s32.totalorder %s28, 1
      %p114 = por %p112, %p113
      %p116 = scmp.ne.s32.totalorder %s101, %s115
      %p117 = scmp.eq.s32.totalorder %s28, 0
      %p118 = por %p116, %p117
      %s120 = sadd.s32 %s119, 1
      %p123 = scmp.eq.s32.totalorder %s22, 1
      %p124 = scmp.ne.s32.totalorder %s119, %s121
      %p125 = scmp.eq.s32.totalorder %s22, 0
      %p126 = por %p124, %p125
      %p127 = scmp.ne.s32.totalorder %s119, %s121
      %p128 = scmp.eq.s32.totalorder %s27, 1
      %p129 = por %p127, %p128
      %p130 = scmp.ne.s32.totalorder %s121, %s122
      %p131 = scmp.eq.s32.totalorder %s27, 0
      %p132 = por %p130, %p131
      %p133 = scmp.ne.s32.totalorder %s121, %s122
      %p134 = scmp.eq.s32.totalorder %s28, 1
      %p135 = por %p133, %p134
      %p137 = scmp.ne.s32.totalorder %s122, %s136
      %p138 = scmp.eq.s32.totalorder %s28, 0
      %p139 = por %p137, %p138
      %s141 = sadd.s32 %s140, 1
      %p144 = scmp.eq.s32.totalorder %s22, 1
      %p145 = scmp.ne.s32.totalorder %s140, %s142
      %p146 = scmp.eq.s32.totalorder %s22, 0
      %p147 = por %p145, %p146
      %p148 = scmp.ne.s32.totalorder %s140, %s142
      %p149 = scmp.eq.s32.totalorder %s27, 1
      %p150 = por %p148, %p149
      %p151 = scmp.ne.s32.totalorder %s142, %s143
      %p152 = scmp.eq.s32.totalorder %s27, 0
      %p153 = por %p151, %p152
      %p154 = scmp.ne.s32.totalorder %s142, %s143
      %p155 = scmp.eq.s32.totalorder %s28, 1
      %p156 = por %p154, %p155
      %p158 = scmp.ne.s32.totalorder %s143, %s157
      %p159 = scmp.eq.s32.totalorder %s28, 0
      %p160 = por %p158, %p159
      %s162 = sadd.s32 %s161, 1
      %p165 = scmp.eq.s32.totalorder %s22, 1
      %p166 = scmp.ne.s32.totalorder %s161, %s163
      %p167 = scmp.eq.s32.totalorder %s22, 0
      %p168 = por %p166, %p167
      %p169 = scmp.ne.s32.totalorder %s161, %s163
      %p170 = scmp.eq.s32.totalorder %s27, 1
      %p171 = por %p169, %p170
      %p172 = scmp.ne.s32.totalorder %s163, %s164
      %p173 = scmp.eq.s32.totalorder %s27, 0
      %p174 = por %p172, %p173
      %p175 = scmp.ne.s32.totalorder %s163, %s164
      %p176 = scmp.eq.s32.totalorder %s28, 1
      %p177 = por %p175, %p176
      %p179 = scmp.ne.s32.totalorder %s164, %s178
      %p180 = scmp.eq.s32.totalorder %s28, 0
      %p181 = por %p179, %p180
      %s183 = sadd.s32 %s182, 1
      %p186 = scmp.eq.s32.totalorder %s22, 1
      %p187 = scmp.ne.s32.totalorder %s182, %s184
      %p188 = scmp.eq.s32.totalorder %s22, 0
      %p189 = por %p187, %p188
      %p190 = scmp.ne.s32.totalorder %s182, %s184
      %p191 = scmp.eq.s32.totalorder %s27, 1
      %p192 = por %p190, %p191
      %p193 = scmp.ne.s32.totalorder %s184, %s185
      %p194 = scmp.eq.s32.totalorder %s27, 0
      %p195 = por %p193, %p194
      %p196 = scmp.ne.s32.totalorder %s184, %s185
      %p197 = scmp.eq.s32.totalorder %s28, 1
      %p198 = por %p196, %p197
      %p200 = scmp.ne.s32.totalorder %s185, %s199
      %p201 = scmp.eq.s32.totalorder %s28, 0
      %p202 = por %p200, %p201
      %s204 = sadd.s32 %s203, 1
      %p207 = scmp.eq.s32.totalorder %s22, 1
      %p208 = scmp.ne.s32.totalorder %s203, %s205
      %p209 = scmp.eq.s32.totalorder %s22, 0
      %p210 = por %p208, %p209
      %p211 = scmp.ne.s32.totalorder %s203, %s205
      %p212 = scmp.eq.s32.totalorder %s27, 1
      %p213 = por %p211, %p212
      %p214 = scmp.ne.s32.totalorder %s205, %s206
      %p215 = scmp.eq.s32.totalorder %s27, 0
      %p216 = por %p214, %p215
      %p217 = scmp.ne.s32.totalorder %s205, %s206
      %p218 = scmp.eq.s32.totalorder %s28, 1
      %p219 = por %p217, %p218
      %p221 = scmp.ne.s32.totalorder %s206, %s220
      %p222 = scmp.eq.s32.totalorder %s28, 0
      %p223 = por %p221, %p222
      %s225 = sadd.s32 %s224, 1
      %p228 = scmp.eq.s32.totalorder %s22, 1
      %p229 = scmp.ne.s32.totalorder %s224, %s226
      %p230 = scmp.eq.s32.totalorder %s22, 0
      %p231 = por %p229, %p230
      %p232 = scmp.ne.s32.totalorder %s224, %s226
      %p233 = scmp.eq.s32.totalorder %s27, 1
      %p234 = por %p232, %p233
      %p235 = scmp.ne.s32.totalorder %s226, %s227
      %p236 = scmp.eq.s32.totalorder %s27, 0
      %p237 = por %p235, %p236
      %p238 = scmp.ne.s32.totalorder %s226, %s227
      %p239 = scmp.eq.s32.totalorder %s28, 1
      %p240 = por %p238, %p239
      %p242 = scmp.ne.s32.totalorder %s227, %s241
      %p243 = scmp.eq.s32.totalorder %s28, 0
      %p244 = por %p242, %p243
      %s246 = sadd.s32 %s245, 1
      %p249 = scmp.eq.s32.totalorder %s22, 1
      %p250 = scmp.ne.s32.totalorder %s245, %s247
      %p251 = scmp.eq.s32.totalorder %s22, 0
      %p252 = por %p250, %p251
      %p253 = scmp.ne.s32.totalorder %s245, %s247
      %p254 = scmp.eq.s32.totalorder %s27, 1
      %p255 = por %p253, %p254
      %p256 = scmp.ne.s32.totalorder %s247, %s248
      %p257 = scmp.eq.s32.totalorder %s27, 0
      %p258 = por %p256, %p257
      %p259 = scmp.ne.s32.totalorder %s247, %s248
      %p260 = scmp.eq.s32.totalorder %s28, 1
      %p261 = por %p259, %p260
      %p263 = scmp.ne.s32.totalorder %s248, %s262
      %p264 = scmp.eq.s32.totalorder %s28, 0
      %p265 = por %p263, %p264
      %s267 = sadd.s32 %s266, 1
      %p270 = scmp.eq.s32.totalorder %s22, 1
      %p271 = scmp.ne.s32.totalorder %s266, %s268
      %p272 = scmp.eq.s32.totalorder %s22, 0
      %p273 = por %p271, %p272
      %p274 = scmp.ne.s32.totalorder %s266, %s268
      %p275 = scmp.eq.s32.totalorder %s27, 1
      %p276 = por %p274, %p275
      %p277 = scmp.ne.s32.totalorder %s268, %s269
      %p278 = scmp.eq.s32.totalorder %s27, 0
      %p279 = por %p277, %p278
      %p280 = scmp.ne.s32.totalorder %s268, %s269
      %p281 = scmp.eq.s32.totalorder %s28, 1
      %p282 = por %p280, %p281
      %p284 = scmp.ne.s32.totalorder %s269, %s283
      %p285 = scmp.eq.s32.totalorder %s28, 0
      %p286 = por %p284, %p285
      %s287 = ssub.s32 %s22, %s29
      %p288 = scmp.eq.s32.totalorder %s287, 0
      %s290 = sadd.s32 %s289, 1
      %s291 = scalar_select %p288, %s289, %s290
      %p294 = pneg %p288
      %p295 = scmp.eq.s32.totalorder %s22, 1
      %p296 = por %p294, %p295
      %p297 = scmp.ne.s32.totalorder %s289, %s292
      %p298 = scmp.eq.s32.totalorder %s22, 0
      %p299 = por %p297, %p298
      %p300 = scmp.ne.s32.totalorder %s289, %s292
      %p301 = scmp.eq.s32.totalorder %s27, 1
      %p302 = por %p300, %p301
      %p303 = scmp.ne.s32.totalorder %s292, %s293
      %p304 = scmp.eq.s32.totalorder %s27, 0
      %p305 = por %p303, %p304
      %p306 = scmp.ne.s32.totalorder %s292, %s293
      %p307 = scmp.eq.s32.totalorder %s28, 1
      %p308 = por %p306, %p307
      %p310 = scmp.ne.s32.totalorder %s293, %s309
      %p311 = scmp.eq.s32.totalorder %s28, 0
      %p312 = por %p310, %p311
      %p313 = scmp.le.s32.totalorder 1, %s22
      %p314 = scmp.lt.s32.totalorder %s22, 3
      %p315 = pnand %p313, %p314
      %p316 = pneg %p315
      // Predicated region
      $region9: #{tpu_custom_call.1} parent=5 // pred_check
        _
      $region10: #{tpu_custom_call.1} parent=5 // pred_check_branch
        %318 = sbr.rel (%p315) target = $region12
      $region11: #{tpu_custom_call.1} parent=5 // pred_region
        %s319 = ssub.s32 %s22, 1
        // Predicated region
        $region13: #{tpu_custom_call.1} parent=11 // pred_check
          %p320 = pneg %p69
        $region14: #{tpu_custom_call.1} parent=11 // pred_check_branch
          %322 = sbr.rel (%p320) target = $region16
        $region15: #{tpu_custom_call.1} parent=11 // pred_region
          _
        $region16: #{tpu_custom_call.1} parent=11 // pred_fallthru
          _
        // Predicated region
        $region17: #{tpu_custom_call.1} parent=11 // pred_check
          %p323 = pneg %p90
        $region18: #{tpu_custom_call.1} parent=11 // pred_check_branch
          %325 = sbr.rel (%p323) target = $region20
        $region19: #{tpu_custom_call.1} parent=11 // pred_region
          _
        $region20: #{tpu_custom_call.1} parent=11 // pred_fallthru
          _
        // Predicated region
        $region21: #{tpu_custom_call.1} parent=11 // pred_check
          %p326 = pneg %p111
        $region22: #{tpu_custom_call.1} parent=11 // pred_check_branch
          %328 = sbr.rel (%p326) target = $region24
        $region23: #{tpu_custom_call.1} parent=11 // pred_region
          %s330 = ssub.s32 64, 64
          %331 = vsyncadd [#allocation3], %s330
          %s333 = sshll.u32 [#allocation2], 4
          %s334 = int_to_ptr.vmem [resolvable:$true] %s333
          %336 = dma.hbm_to_vmem [thread:$0]  %s3, 64, %s334, [#allocation3]
        $region24: #{tpu_custom_call.1} parent=11 // pred_fallthru
          _
        // Predicated region
        $region25: #{tpu_custom_call.1} parent=11 // pred_check
          %p337 = pneg %p132
        $region26: #{tpu_custom_call.1} parent=11 // pred_check_branch
          %339 = sbr.rel (%p337) target = $region28
        $region27: #{tpu_custom_call.1} parent=11 // pred_region
          _
        $region28: #{tpu_custom_call.1} parent=11 // pred_fallthru
          _
        // Predicated region
        $region29: #{tpu_custom_call.1} parent=11 // pred_check
          %p340 = pneg %p153
        $region30: #{tpu_custom_call.1} parent=11 // pred_check_branch
          %342 = sbr.rel (%p340) target = $region32
        $region31: #{tpu_custom_call.1} parent=11 // pred_region
          _
        $region32: #{tpu_custom_call.1} parent=11 // pred_fallthru
          _
        // Predicated region
        $region33: #{tpu_custom_call.1} parent=11 // pred_check
          %p343 = pneg %p174
        $region34: #{tpu_custom_call.1} parent=11 // pred_check_branch
          %345 = sbr.rel (%p343) target = $region36
        $region35: #{tpu_custom_call.1} parent=11 // pred_region
          _
        $region36: #{tpu_custom_call.1} parent=11 // pred_fallthru
          _
        // Predicated region
        $region37: #{tpu_custom_call.1} parent=11 // pred_check
          %p346 = pneg %p195
        $region38: #{tpu_custom_call.1} parent=11 // pred_check_branch
          %348 = sbr.rel (%p346) target = $region40
        $region39: #{tpu_custom_call.1} parent=11 // pred_region
          _
        $region40: #{tpu_custom_call.1} parent=11 // pred_fallthru
          _
        // Predicated region
        $region41: #{tpu_custom_call.1} parent=11 // pred_check
          %p349 = pneg %p216
        $region42: #{tpu_custom_call.1} parent=11 // pred_check_branch
          %351 = sbr.rel (%p349) target = $region44
        $region43: #{tpu_custom_call.1} parent=11 // pred_region
          _
        $region44: #{tpu_custom_call.1} parent=11 // pred_fallthru
          _
        // Predicated region
        $region45: #{tpu_custom_call.1} parent=11 // pred_check
          %p352 = pneg %p237
        $region46: #{tpu_custom_call.1} parent=11 // pred_check_branch
          %354 = sbr.rel (%p352) target = $region48
        $region47: #{tpu_custom_call.1} parent=11 // pred_region
          _
        $region48: #{tpu_custom_call.1} parent=11 // pred_fallthru
          _
        // Predicated region
        $region49: #{tpu_custom_call.1} parent=11 // pred_check
          %p355 = pneg %p258
        $region50: #{tpu_custom_call.1} parent=11 // pred_check_branch
          %357 = sbr.rel (%p355) target = $region52
        $region51: #{tpu_custom_call.1} parent=11 // pred_region
          _
        $region52: #{tpu_custom_call.1} parent=11 // pred_fallthru
          _
        // Predicated region
        $region53: #{tpu_custom_call.1} parent=11 // pred_check
          %p358 = pneg %p279
        $region54: #{tpu_custom_call.1} parent=11 // pred_check_branch
          %360 = sbr.rel (%p358) target = $region56
        $region55: #{tpu_custom_call.1} parent=11 // pred_region
          _
        $region56: #{tpu_custom_call.1} parent=11 // pred_fallthru
          _
      $region12: #{tpu_custom_call.1} parent=5 // pred_fallthru
        _
      %p361 = scmp.lt.s32.totalorder %s22, 2
      // Predicated region
      $region57: #{tpu_custom_call.1} parent=5 // pred_check
        %p362 = pneg %p361
      $region58: #{tpu_custom_call.1} parent=5 // pred_check_branch
        %364 = sbr.rel (%p362) target = $region60
      $region59: #{tpu_custom_call.1} parent=5 // pred_region
        // Predicated region
        $region61: #{tpu_custom_call.1} parent=59 // pred_check
          %p365 = pneg %p42
        $region62: #{tpu_custom_call.1} parent=59 // pred_check_branch
          %367 = sbr.rel (%p365) target = $region64
        $region63: #{tpu_custom_call.1} parent=59 // pred_region
          %p368 = scmp.lt.s32.totalorder %s22, 1
          %s369 = scalar_select %p368, %s22, 1
          %s370 = smul.addr %s369, 2
          %s371 = smul.addr %s370, 8
          %s372 = scalar_lea.vmem %s0, %s371
        $region64: #{tpu_custom_call.1} parent=59 // pred_fallthru
          _
      $region60: #{tpu_custom_call.1} parent=5 // pred_fallthru
        _
      %p373 = scmp.le.s32.totalorder 1, %s22
      %p374 = scmp.lt.s32.totalorder %s22, 3
      %p375 = pnand %p373, %p374
      %p376 = pneg %p375
      // Predicated region
      $region65: #{tpu_custom_call.1} parent=5 // pred_check
        _
      $region66: #{tpu_custom_call.1} parent=5 // pred_check_branch
        %378 = sbr.rel (%p375) target = $region68
      $region67: #{tpu_custom_call.1} parent=5 // pred_region
        %s379 = ssub.s32 %s22, 1
        // Predicated region
        $region69: #{tpu_custom_call.1} parent=67 // pred_check
          %p380 = pneg %p111
        $region70: #{tpu_custom_call.1} parent=67 // pred_check_branch
          %382 = sbr.rel (%p380) target = $region72
        $region71: #{tpu_custom_call.1} parent=67 // pred_region
          %383 = dma.done [#allocation3], 64
        $region72: #{tpu_custom_call.1} parent=67 // pred_fallthru
          _
        %p384 = scmp.lt.s32.totalorder %s27, 1
        %s385 = scalar_select %p384, %s27, 1
        %s386 = smul.addr %s385, 2
        %s387 = smul.addr %s386, 8
        %s388 = scalar_lea.vmem %s0, %s387
        %p389 = pneg %p48
        %p390 = pneg %p45
        %p391 = pneg %p69
        %p392 = pneg %p66
        %p393 = pneg %p90
        %p394 = pneg %p87
        %p395 = pneg %p111
        %p396 = pneg %p108
        %p397 = pneg %p132
        %p398 = pneg %p129
        %p399 = pneg %p153
        %p400 = pneg %p150
        %p401 = pneg %p174
        %p402 = pneg %p171
        %p403 = pneg %p195
        %p404 = pneg %p192
        %p405 = pneg %p216
        %p406 = pneg %p213
        %p407 = pneg %p237
        %p408 = pneg %p234
        %p409 = pneg %p258
        %p410 = pneg %p255
        %p411 = pneg %p279
        %p412 = pneg %p276
        %p413 = pneg %p305
        %p414 = pneg %p302
        %s415 = sand.u32 %s292, 1
        %s416 = scalar_lea.sflag [#allocation4], %s415
        %s417 = sand.u32 %s292, 1
        %s418 = smul.addr %s417, 16
        %s419 = scalar_lea.vmem [#allocation5], %s418
        %p420 = scmp.lt.s32.totalorder %s27, 1
        %s421 = scalar_select %p420, %s27, 1
        %s422 = smul.addr %s421, 2
        %s423 = smul.addr %s422, 8
        %s424 = scalar_lea.vmem %s0, %s423
        %v425 = vld [vmem:[%s424] sm:$0xff]
        %v426 = vld [vmem:[%s424 + $0x8] sm:$0xff]
        %v427 = vld [vmem:[#allocation2] sm:$0xf]
        %v430 = vrot.slane %v425, 4
        %v431 = vrot.slane %v426, 4
        %vm432 = vcmask 31744
        %v434 = vsel %vm432, %v427, 0
        %vm436 = vcmask 1043456
        %v437 = vsel %vm436, %v430, 0
        %v439 = vsel %vm436, %v431, 0
        %441 = vmatprep.subr.mxu0 %v439
        %442 = vmatpush1.msra.mxu0 %v437
        %443 = vmatprep.subr.mxu0 0.0
        %444 = vmatpush1.msra.mxu0 0.0
        %445 = vmatprep.subr.mxu0 0.0
        %446 = vmatpush1.msra.mxu0 0.0
        %447 = vmatprep.subr.mxu0 0.0
        %448 = vmatpush1.msra.mxu0 0.0
        %449 = vmatprep.subr.mxu0 0.0
        %450 = vmatpush1.msra.mxu0 0.0
        %451 = vmatprep.subr.mxu0 0.0
        %452 = vmatpush1.msra.mxu0 0.0
        %453 = vmatprep.subr.mxu0 0.0
        %454 = vmatpush1.msra.mxu0 0.0
        %455 = vmatprep.subr.mxu0 0.0
        %456 = vmatpush1.msra.mxu0 0.0
        %457 = vmatprep.subr.mxu0 0.0
        %458 = vmatpush1.msra.mxu0 0.0
        %459 = vmatprep.subr.mxu0 0.0
        %460 = vmatpush1.msra.mxu0 0.0
        %461 = vmatprep.subr.mxu0 0.0
        %462 = vmatpush1.msra.mxu0 0.0
        %463 = vmatprep.subr.mxu0 0.0
        %464 = vmatpush1.msra.mxu0 0.0
        %465 = vmatprep.subr.mxu0 0.0
        %466 = vmatpush1.msra.mxu0 0.0
        %467 = vmatprep.subr.mxu0 0.0
        %468 = vmatpush1.msra.mxu0 0.0
        %469 = vmatprep.subr.mxu0 0.0
        %470 = vmatpush1.msra.mxu0 0.0
        %471 = vmatprep.subr.mxu0 0.0
        %472 = vmatpush1.msra.mxu0 0.0
        %473 = vmatprep.subr.mxu0 0.0
        %474 = vmatpush1.msra.mxu0 0.0
        %475 = vmatprep.subr.mxu0 0.0
        %476 = vmatpush1.msra.mxu0 0.0
        %477 = vmatprep.subr.mxu0 0.0
        %478 = vmatpush1.msra.mxu0 0.0
        %479 = vmatprep.subr.mxu0 0.0
        %480 = vmatpush1.msra.mxu0 0.0
        %481 = vmatprep.subr.mxu0 0.0
        %482 = vmatpush1.msra.mxu0 0.0
        %483 = vmatprep.subr.mxu0 0.0
        %484 = vmatpush1.msra.mxu0 0.0
        %485 = vmatprep.subr.mxu0 0.0
        %486 = vmatpush1.msra.mxu0 0.0
        %487 = vmatprep.subr.mxu0 0.0
        %488 = vmatpush1.msra.mxu0 0.0
        %489 = vmatprep.subr.mxu0 0.0
        %490 = vmatpush1.msra.mxu0 0.0
        %491 = vmatprep.subr.mxu0 0.0
        %492 = vmatpush1.msra.mxu0 0.0
        %493 = vmatprep.subr.mxu0 0.0
        %494 = vmatpush1.msra.mxu0 0.0
        %495 = vmatprep.subr.mxu0 0.0
        %496 = vmatpush1.msra.mxu0 0.0
        %497 = vmatprep.subr.mxu0 0.0
        %498 = vmatpush1.msra.mxu0 0.0
        %499 = vmatprep.subr.mxu0 0.0
        %500 = vmatpush1.msra.mxu0 0.0
        %501 = vmatprep.subr.mxu0 0.0
        %502 = vmatpush1.msra.mxu0 0.0
        %503 = vmatprep.subr.mxu0 0.0
        %504 = vmatpush1.msra.mxu0 0.0
        %505 = vmatprep.mubr.f32.mxu0 0.0
        %506 = vmatmul.mubr.f32.gmra.mrb[0].mxu0 %v434
        %v507 = vpop.f32.mrb[0].mxu0
        %v508 = vadd.f32 0.0, %v507
        %v509 = vpop.f32.mrb[0].mxu0
        %v510 = vadd.f32 0.0, %v509
        %511 = vdwg.mxu0
        %v512 = vld [vmem:[%s4] sm:$0xf]
        %514 = vset.pattern.permute.xlu0 0
        %515 = vperm.xlu0 %514, %v512
        %v516 = vpop.permute.xlu0 %515
        %v518 = vmul.f32 %v508, %v516
        %v519 = vmul.f32 %v510, %v516
        %v520 = vld [vmem:[%s5] sm:$0xf]
        %522 = vset.pattern.permute.xlu0 0
        %523 = vperm.xlu0 %522, %v520
        %v524 = vpop.permute.xlu0 %523
        %v526 = vadd.f32 %v518, %v524
        %v527 = vadd.f32 %v519, %v524
        %v528 = vmax.f32 %v526, 0.0
        %v529 = vmax.f32 %v527, 0.0
        %v530 = vld [vmem:[%s6] sm:$0xf]
        %v531 = vld [vmem:[%s1] sm:$0xff]
        %v532 = vld [vmem:[%s1 + $0x8] sm:$0xff]
        %v533 = vld [vmem:[%s1 + $0x10] sm:$0x1]
        %v534 = vld [vmem:[%s1 + $0x18] sm:$0x1]
        %536 = vset.pattern.permute.xlu0 4
        %537 = vperm.xlu0 %536, %v530
        %v538 = vpop.permute.xlu0 %537
        %v540 = vmul.f32 %v538, %v528
        %v541 = vmul.f32 %v538, %v529
        %544 = vrot.lane.b32.xlu0 %v528, 17
        %v545 = vpop.permute.xlu0 %544
        %546 = vrot.lane.b32.xlu0 %v529, 17
        %v547 = vpop.permute.xlu0 %546
        %vm548 = vcmask 138240
        %v549 = vsel %vm548, %v545, %v547
        %v552 = vsel %vm548, 0.0, %v545
        %v553 = vlaneseq
        %v554 = vshrl.u32 %v553, 7
        %v555 = vsub.s32 0, %v554
        %v556 = vrot.slane %v531, %v555
        %v557 = vlaneseq
        %v558 = vshrl.u32 %v557, 7
        %v559 = vsub.s32 0, %v558
        %v560 = vrot.slane %v532, %v559
        %v561 = vmul.f32 %v552, %v556
        %v562 = vmul.f32 %v549, %v560
        %563 = vset.pattern.permute.xlu0 0
        %564 = vperm.xlu0 %563, %v530
        %v565 = vpop.permute.xlu0 %564
        %v567 = vmul.f32 %v565, %v561
        %v568 = vmul.f32 %v565, %v562
        %v569 = vadd.f32 %v540, %v567
        %v570 = vadd.f32 %v541, %v568
        %571 = vrot.lane.b32.xlu0 %v528, 16
        %v572 = vpop.permute.xlu0 %571
        %573 = vrot.lane.b32.xlu0 %v529, 16
        %v574 = vpop.permute.xlu0 %573
        %vm575 = vcmask 130048
        %v576 = vsel %vm575, %v572, %v574
        %v579 = vsel %vm575, 0.0, %v572
        %v580 = vlaneseq
        %v581 = vshrl.u32 %v580, 7
        %v582 = vsub.s32 1, %v581
        %v583 = vrot.slane %v531, %v582
        %v584 = vlaneseq
        %v585 = vshrl.u32 %v584, 7
        %v586 = vsub.s32 1, %v585
        %v587 = vrot.slane %v532, %v586
        %v588 = vmul.f32 %v579, %v583
        %v589 = vmul.f32 %v576, %v587
        %590 = vset.pattern.permute.xlu0 1
        %591 = vperm.xlu0 %590, %v530
        %v592 = vpop.permute.xlu0 %591
        %v594 = vmul.f32 %v592, %v588
        %v595 = vmul.f32 %v592, %v589
        %v596 = vadd.f32 %v569, %v594
        %v597 = vadd.f32 %v570, %v595
        %598 = vrot.lane.b32.xlu0 %v528, 15
        %v599 = vpop.permute.xlu0 %598
        %600 = vrot.lane.b32.xlu0 %v529, 15
        %v601 = vpop.permute.xlu0 %600
        %vm602 = vcmask 121856
        %v603 = vsel %vm602, %v599, %v601
        %v606 = vsel %vm602, 0.0, %v599
        %v607 = vlaneseq
        %v608 = vshrl.u32 %v607, 7
        %v609 = vsub.s32 2, %v608
        %v610 = vrot.slane %v531, %v609
        %v611 = vlaneseq
        %v612 = vshrl.u32 %v611, 7
        %v613 = vsub.s32 2, %v612
        %v614 = vrot.slane %v532, %v613
        %v615 = vmul.f32 %v606, %v610
        %v616 = vmul.f32 %v603, %v614
        %617 = vset.pattern.permute.xlu0 2
        %618 = vperm.xlu0 %617, %v530
        %v619 = vpop.permute.xlu0 %618
        %v621 = vmul.f32 %v619, %v615
        %v622 = vmul.f32 %v619, %v616
        %v623 = vadd.f32 %v596, %v621
        %v624 = vadd.f32 %v597, %v622
        %625 = vrot.lane.b32.xlu0 %v528, 1
        %v626 = vpop.permute.xlu0 %625
        %627 = vrot.lane.b32.xlu0 %v529, 1
        %v628 = vpop.permute.xlu0 %627
        %vm629 = vcmask 7168
        %v630 = vsel %vm629, %v626, %v628
        %v633 = vsel %vm629, 0.0, %v626
        %v634 = vlaneseq
        %v635 = vshrl.u32 %v634, 7
        %v636 = vsub.s32 3, %v635
        %v637 = vrot.slane %v531, %v636
        %v638 = vlaneseq
        %v639 = vshrl.u32 %v638, 7
        %v640 = vsub.s32 3, %v639
        %v641 = vrot.slane %v532, %v640
        %v642 = vmul.f32 %v633, %v637
        %v643 = vmul.f32 %v630, %v641
        %644 = vset.pattern.permute.xlu0 3
        %645 = vperm.xlu0 %644, %v530
        %v646 = vpop.permute.xlu0 %645
        %v648 = vmul.f32 %v646, %v642
        %v649 = vmul.f32 %v646, %v643
        %v650 = vadd.f32 %v623, %v648
        %v651 = vadd.f32 %v624, %v649
        %652 = vrot.lane.b32.xlu0 %v528, 127
        %v653 = vpop.permute.xlu0 %652
        %654 = vrot.lane.b32.xlu0 %v529, 127
        %v655 = vpop.permute.xlu0 %654
        %vm656 = vcmask 1039360
        %v657 = vsel %vm656, %v653, %v655
        %v660 = vsel %vm656, %v655, 0.0
        %v661 = vlaneseq
        %v662 = vshrl.u32 %v661, 7
        %v663 = vsub.s32 5, %v662
        %v664 = vrot.slane %v531, %v663
        %v665 = vlaneseq
        %v666 = vshrl.u32 %v665, 7
        %v667 = vsub.s32 5, %v666
        %v668 = vrot.slane %v532, %v667
        %v669 = vmul.f32 %v657, %v664
        %v670 = vmul.f32 %v660, %v668
        %671 = vset.pattern.permute.xlu0 5
        %672 = vperm.xlu0 %671, %v530
        %v673 = vpop.permute.xlu0 %672
        %v675 = vmul.f32 %v673, %v669
        %v676 = vmul.f32 %v673, %v670
        %v677 = vadd.f32 %v650, %v675
        %v678 = vadd.f32 %v651, %v676
        %679 = vrot.lane.b32.xlu0 %v528, 113
        %v680 = vpop.permute.xlu0 %679
        %681 = vrot.lane.b32.xlu0 %v529, 113
        %v682 = vpop.permute.xlu0 %681
        %vm683 = vcmask 924672
        %v684 = vsel %vm683, %v680, %v682
        %v687 = vsel %vm683, %v682, 0.0
        %v688 = vlaneseq
        %v689 = vshrl.u32 %v688, 7
        %v690 = vsub.s32 6, %v689
        %v691 = vrot.slane %v531, %v690
        %v692 = vlaneseq
        %v693 = vshrl.u32 %v692, 7
        %v694 = vsub.s32 6, %v693
        %v695 = vrot.slane %v532, %v694
        %v696 = vmul.f32 %v684, %v691
        %v697 = vmul.f32 %v687, %v695
        %698 = vset.pattern.permute.xlu0 6
        %699 = vperm.xlu0 %698, %v530
        %v700 = vpop.permute.xlu0 %699
        %v702 = vmul.f32 %v700, %v696
        %v703 = vmul.f32 %v700, %v697
        %v704 = vadd.f32 %v677, %v702
        %v705 = vadd.f32 %v678, %v703
        %706 = vrot.lane.b32.xlu0 %v528, 112
        %v707 = vpop.permute.xlu0 %706
        %708 = vrot.lane.b32.xlu0 %v529, 112
        %v709 = vpop.permute.xlu0 %708
        %vm710 = vcmask 916480
        %v711 = vsel %vm710, %v707, %v709
        %v714 = vsel %vm710, %v709, 0.0
        %v715 = vlaneseq
        %v716 = vshrl.u32 %v715, 7
        %v717 = vsub.s32 7, %v716
        %v718 = vrot.slane %v531, %v717
        %v719 = vlaneseq
        %v720 = vshrl.u32 %v719, 7
        %v721 = vsub.s32 7, %v720
        %v722 = vrot.slane %v532, %v721
        %v723 = vmul.f32 %v711, %v718
        %v724 = vmul.f32 %v714, %v722
        %725 = vset.pattern.permute.xlu0 7
        %726 = vperm.xlu0 %725, %v530
        %v727 = vpop.permute.xlu0 %726
        %v729 = vmul.f32 %v727, %v723
        %v730 = vmul.f32 %v727, %v724
        %v731 = vadd.f32 %v704, %v729
        %v732 = vadd.f32 %v705, %v730
        %733 = vrot.lane.b32.xlu0 %v528, 111
        %v734 = vpop.permute.xlu0 %733
        %735 = vrot.lane.b32.xlu0 %v529, 111
        %v736 = vpop.permute.xlu0 %735
        %vm737 = vcmask 908288
        %v738 = vsel %vm737, %v734, %v736
        %v741 = vsel %vm737, %v736, 0.0
        %v742 = vlaneseq
        %v743 = vshrl.u32 %v742, 7
        %v744 = vsub.s32 0, %v743
        %v745 = vrot.slane %v533, %v744
        %v746 = vlaneseq
        %v747 = vshrl.u32 %v746, 7
        %v748 = vsub.s32 0, %v747
        %v749 = vrot.slane %v534, %v748
        %v750 = vmul.f32 %v738, %v745
        %v751 = vmul.f32 %v741, %v749
        %752 = vset.pattern.permute.xlu0 8
        %753 = vperm.xlu0 %752, %v530
        %v754 = vpop.permute.xlu0 %753
        %v756 = vmul.f32 %v754, %v750
        %v757 = vmul.f32 %v754, %v751
        %v758 = vadd.f32 %v731, %v756
        %v759 = vadd.f32 %v732, %v757
        %v760 = vld [vmem:[%s7] sm:$0xf]
        %762 = vset.pattern.permute.xlu0 0
        %763 = vperm.xlu0 %762, %v760
        %v764 = vpop.permute.xlu0 %763
        %v766 = vmul.f32 %v758, %v764
        %v767 = vmul.f32 %v759, %v764
        %v768 = vld [vmem:[%s8] sm:$0xf]
        %770 = vset.pattern.permute.xlu0 0
        %771 = vperm.xlu0 %770, %v768
        %v772 = vpop.permute.xlu0 %771
        %v774 = vadd.f32 %v766, %v772
        %v775 = vadd.f32 %v767, %v772
        %v776 = vld [vmem:[%s9] sm:$0xff]
        %v778 = vsel %vm432, %v776, 0
        %v781 = vsel %vm436, %v774, 0
        %v784 = vsel %vm436, %v775, 0
        %786 = vmatprep.subr.mxu0 %v784
        %787 = vmatpush1.msra.mxu0 %v781
        %788 = vmatprep.subr.mxu0 0.0
        %789 = vmatpush1.msra.mxu0 0.0
        %790 = vmatprep.subr.mxu0 0.0
        %791 = vmatpush1.msra.mxu0 0.0
        %792 = vmatprep.subr.mxu0 0.0
        %793 = vmatpush1.msra.mxu0 0.0
        %794 = vmatprep.subr.mxu0 0.0
        %795 = vmatpush1.msra.mxu0 0.0
        %796 = vmatprep.subr.mxu0 0.0
        %797 = vmatpush1.msra.mxu0 0.0
        %798 = vmatprep.subr.mxu0 0.0
        %799 = vmatpush1.msra.mxu0 0.0
        %800 = vmatprep.subr.mxu0 0.0
        %801 = vmatpush1.msra.mxu0 0.0
        %802 = vmatprep.subr.mxu0 0.0
        %803 = vmatpush1.msra.mxu0 0.0
        %804 = vmatprep.subr.mxu0 0.0
        %805 = vmatpush1.msra.mxu0 0.0
        %806 = vmatprep.subr.mxu0 0.0
        %807 = vmatpush1.msra.mxu0 0.0
        %808 = vmatprep.subr.mxu0 0.0
        %809 = vmatpush1.msra.mxu0 0.0
        %810 = vmatprep.subr.mxu0 0.0
        %811 = vmatpush1.msra.mxu0 0.0
        %812 = vmatprep.subr.mxu0 0.0
        %813 = vmatpush1.msra.mxu0 0.0
        %814 = vmatprep.subr.mxu0 0.0
        %815 = vmatpush1.msra.mxu0 0.0
        %816 = vmatprep.subr.mxu0 0.0
        %817 = vmatpush1.msra.mxu0 0.0
        %818 = vmatprep.subr.mxu0 0.0
        %819 = vmatpush1.msra.mxu0 0.0
        %820 = vmatprep.subr.mxu0 0.0
        %821 = vmatpush1.msra.mxu0 0.0
        %822 = vmatprep.subr.mxu0 0.0
        %823 = vmatpush1.msra.mxu0 0.0
        %824 = vmatprep.subr.mxu0 0.0
        %825 = vmatpush1.msra.mxu0 0.0
        %826 = vmatprep.subr.mxu0 0.0
        %827 = vmatpush1.msra.mxu0 0.0
        %828 = vmatprep.subr.mxu0 0.0
        %829 = vmatpush1.msra.mxu0 0.0
        %830 = vmatprep.subr.mxu0 0.0
        %831 = vmatpush1.msra.mxu0 0.0
        %832 = vmatprep.subr.mxu0 0.0
        %833 = vmatpush1.msra.mxu0 0.0
        %834 = vmatprep.subr.mxu0 0.0
        %835 = vmatpush1.msra.mxu0 0.0
        %836 = vmatprep.subr.mxu0 0.0
        %837 = vmatpush1.msra.mxu0 0.0
        %838 = vmatprep.subr.mxu0 0.0
        %839 = vmatpush1.msra.mxu0 0.0
        %840 = vmatprep.subr.mxu0 0.0
        %841 = vmatpush1.msra.mxu0 0.0
        %842 = vmatprep.subr.mxu0 0.0
        %843 = vmatpush1.msra.mxu0 0.0
        %844 = vmatprep.subr.mxu0 0.0
        %845 = vmatpush1.msra.mxu0 0.0
        %846 = vmatprep.subr.mxu0 0.0
        %847 = vmatpush1.msra.mxu0 0.0
        %848 = vmatprep.subr.mxu0 0.0
        %849 = vmatpush1.msra.mxu0 0.0
        %850 = vmatprep.mubr.f32.mxu0 0.0
        %851 = vmatmul.mubr.f32.gmra.mrb[0].mxu0 %v778
        %v852 = vpop.f32.mrb[0].mxu0
        %v853 = vadd.f32 0.0, %v852
        %v854 = vpop.f32.mrb[0].mxu0
        %v855 = vadd.f32 0.0, %v854
        %856 = vdwg.mxu0
        %v857 = vld [vmem:[%s10] sm:$0xff]
        %859 = vset.pattern.permute.xlu0 0
        %860 = vperm.xlu0 %859, %v857
        %v861 = vpop.permute.xlu0 %860
        %v863 = vmul.f32 %v853, %v861
        %v864 = vmul.f32 %v855, %v861
        %v865 = vld [vmem:[%s11] sm:$0xff]
        %867 = vset.pattern.permute.xlu0 0
        %868 = vperm.xlu0 %867, %v865
        %v869 = vpop.permute.xlu0 %868
        %v871 = vadd.f32 %v863, %v869
        %v872 = vadd.f32 %v864, %v869
        %v873 = vmax.f32 %v871, 0.0
        %v874 = vmax.f32 %v872, 0.0
        %v875 = vld [vmem:[%s2] sm:$0xff]
        %v877 = vsel %vm432, %v875, 0
        %v879 = vsel %vm436, %v425, 0
        %v881 = vsel %vm436, %v426, 0
        %883 = vmatprep.subr.mxu0 %v881
        %884 = vmatpush1.msra.mxu0 %v879
        %885 = vmatprep.subr.mxu0 0.0
        %886 = vmatpush1.msra.mxu0 0.0
        %887 = vmatprep.subr.mxu0 0.0
        %888 = vmatpush1.msra.mxu0 0.0
        %889 = vmatprep.subr.mxu0 0.0
        %890 = vmatpush1.msra.mxu0 0.0
        %891 = vmatprep.subr.mxu0 0.0
        %892 = vmatpush1.msra.mxu0 0.0
        %893 = vmatprep.subr.mxu0 0.0
        %894 = vmatpush1.msra.mxu0 0.0
        %895 = vmatprep.subr.mxu0 0.0
        %896 = vmatpush1.msra.mxu0 0.0
        %897 = vmatprep.subr.mxu0 0.0
        %898 = vmatpush1.msra.mxu0 0.0
        %899 = vmatprep.subr.mxu0 0.0
        %900 = vmatpush1.msra.mxu0 0.0
        %901 = vmatprep.subr.mxu0 0.0
        %902 = vmatpush1.msra.mxu0 0.0
        %903 = vmatprep.subr.mxu0 0.0
        %904 = vmatpush1.msra.mxu0 0.0
        %905 = vmatprep.subr.mxu0 0.0
        %906 = vmatpush1.msra.mxu0 0.0
        %907 = vmatprep.subr.mxu0 0.0
        %908 = vmatpush1.msra.mxu0 0.0
        %909 = vmatprep.subr.mxu0 0.0
        %910 = vmatpush1.msra.mxu0 0.0
        %911 = vmatprep.subr.mxu0 0.0
        %912 = vmatpush1.msra.mxu0 0.0
        %913 = vmatprep.subr.mxu0 0.0
        %914 = vmatpush1.msra.mxu0 0.0
        %915 = vmatprep.subr.mxu0 0.0
        %916 = vmatpush1.msra.mxu0 0.0
        %917 = vmatprep.subr.mxu0 0.0
        %918 = vmatpush1.msra.mxu0 0.0
        %919 = vmatprep.subr.mxu0 0.0
        %920 = vmatpush1.msra.mxu0 0.0
        %921 = vmatprep.subr.mxu0 0.0
        %922 = vmatpush1.msra.mxu0 0.0
        %923 = vmatprep.subr.mxu0 0.0
        %924 = vmatpush1.msra.mxu0 0.0
        %925 = vmatprep.subr.mxu0 0.0
        %926 = vmatpush1.msra.mxu0 0.0
        %927 = vmatprep.subr.mxu0 0.0
        %928 = vmatpush1.msra.mxu0 0.0
        %929 = vmatprep.subr.mxu0 0.0
        %930 = vmatpush1.msra.mxu0 0.0
        %931 = vmatprep.subr.mxu0 0.0
        %932 = vmatpush1.msra.mxu0 0.0
        %933 = vmatprep.subr.mxu0 0.0
        %934 = vmatpush1.msra.mxu0 0.0
        %935 = vmatprep.subr.mxu0 0.0
        %936 = vmatpush1.msra.mxu0 0.0
        %937 = vmatprep.subr.mxu0 0.0
        %938 = vmatpush1.msra.mxu0 0.0
        %939 = vmatprep.subr.mxu0 0.0
        %940 = vmatpush1.msra.mxu0 0.0
        %941 = vmatprep.subr.mxu0 0.0
        %942 = vmatpush1.msra.mxu0 0.0
        %943 = vmatprep.subr.mxu0 0.0
        %944 = vmatpush1.msra.mxu0 0.0
        %945 = vmatprep.subr.mxu0 0.0
        %946 = vmatpush1.msra.mxu0 0.0
        %947 = vmatprep.mubr.f32.mxu0 0.0
        %948 = vmatmul.mubr.f32.gmra.mrb[0].mxu0 %v877
        %v949 = vpop.f32.mrb[0].mxu0
        %v950 = vadd.f32 0.0, %v949
        %v951 = vpop.f32.mrb[0].mxu0
        %v952 = vadd.f32 0.0, %v951
        %953 = vdwg.mxu0
        %v954 = vadd.f32 %v873, %v950
        %v955 = vadd.f32 %v874, %v952
        %956 = vst [vmem:[%s419] sm:$0xff] %v954
        %957 = vst [vmem:[%s419 + $0x8] sm:$0xff] %v955
        %s958 = sand.u32 %s292, 1
        %s959 = scalar_lea.sflag [#allocation4], %s958
        %s960 = sand.u32 %s292, 1
        %s961 = smul.addr %s960, 16
        %s962 = scalar_lea.vmem [#allocation5], %s961
        // Predicated region
        $region73: #{tpu_custom_call.1} parent=67 // pred_check
          %p963 = pneg %p302
        $region74: #{tpu_custom_call.1} parent=67 // pred_check_branch
          %965 = sbr.rel (%p963) target = $region76
        $region75: #{tpu_custom_call.1} parent=67 // pred_region
          %s967 = ssub.s32 256, 256
          %968 = vsyncadd %s959, %s967
          %s969 = smul.addr %s27, 2
          %s970 = smul.addr %s969, 128
          %s971 = scalar_lea.hbm %s12, %s970
          %s973 = sshll.u32 %s962, 4
          %s974 = int_to_ptr.vmem [resolvable:$true] %s973
          %976 = dma.vmem_to_hbm [thread:$0]  %s974, 256, %s971, %s959
        $region76: #{tpu_custom_call.1} parent=67 // pred_fallthru
          _
      $region68: #{tpu_custom_call.1} parent=5 // pred_fallthru
        _
      %p977 = scmp.le.s32.totalorder 2, %s22
      // Predicated region
      $region77: #{tpu_custom_call.1} parent=5 // pred_check
        %p978 = pneg %p977
      $region78: #{tpu_custom_call.1} parent=5 // pred_check_branch
        %980 = sbr.rel (%p978) target = $region80
      $region79: #{tpu_custom_call.1} parent=5 // pred_region
        %s981 = ssub.s32 %s22, 2
        // Predicated region
        $region81: #{tpu_custom_call.1} parent=79 // pred_check
          %p982 = pneg %p308
        $region82: #{tpu_custom_call.1} parent=79 // pred_check_branch
          %984 = sbr.rel (%p982) target = $region84
        $region83: #{tpu_custom_call.1} parent=79 // pred_region
          %s985 = sand.u32 %s293, 1
          %s986 = scalar_lea.sflag [#allocation4], %s985
          %s987 = sand.u32 %s293, 1
          %s988 = smul.addr %s987, 16
          %s989 = scalar_lea.vmem [#allocation5], %s988
          %990 = dma.done %s986, 256
        $region84: #{tpu_custom_call.1} parent=79 // pred_fallthru
          _
      $region80: #{tpu_custom_call.1} parent=5 // pred_fallthru
        _
    $region6: #{tpu_custom_call.1} parent=1 // loop_footer
      %s26 = sadd.s32 1, %s22
    $region7: #{tpu_custom_call.1} parent=1 // loop_footer_branch
      %21 = sbr.rel target = $region3
    $region8: #{tpu_custom_call.1} parent=1 // loop_exit
      _
    %991 = vsyncpa [#allocation3], 1
    %s992 = scalar_lea.sflag [#allocation3], 1
    %993 = vsyncpa %s992, 1
    %994 = vsyncpa [#allocation4], 1
    %s995 = scalar_lea.sflag [#allocation4], 1
    %996 = vsyncpa %s995, 1

</llo_original>
